<compile_context>
chip_gen: v5e
topology: v5e:2x2
jax: 0.10.0
libtpu: 0.0.40
codegen_flags: <defaults>
</compile_context>

<pallas_src>
import jax
import jax.numpy as jnp
from jax.experimental import pallas as pl
from jax.experimental.pallas import tpu as pltpu

_LANE = 128
_NEG_INF = -1e30
_VMEM_LIMIT = 32 * 1024 * 1024   # fits the 2048 tiles (~20 MiB) on every gen
_SMALL_MAX = 1024                # fully-fused single-kernel path up to this n


def _round_up(x, m):
    return ((x + m - 1) // m) * m


def _pad2(x, rows, cols, fill=0.0):
    return jnp.pad(
        x,
        ((0, rows - x.shape[0]), (0, cols - x.shape[1])),
        constant_values=fill,
    )


def _softmax_rows(logits):
    m = jnp.max(logits, axis=-1, keepdims=True)
    e = jnp.exp(logits - m)
    return e / jnp.sum(e, axis=-1, keepdims=True)   # exact division (cheap)


# ----------------------------- kernels --------------------------------------


def _fused_small_kernel(a_ref, x_ref, w1_ref, b1_ref, w2_ref, b2_ref,
                        wp_ref, bp_ref, o_ref):
    """Whole model in one kernel: everything VMEM-resident (small graphs)."""
    a = a_ref[...]
    # GraphConv 1: relu(A @ (X @ W1) + b1)
    h = jnp.dot(x_ref[...], w1_ref[...], preferred_element_type=jnp.float32)
    h = jnp.dot(a, h.astype(jnp.bfloat16), preferred_element_type=jnp.float32)
    h = jnp.maximum(h + b1_ref[...], 0.0).astype(jnp.bfloat16)
    # Dropout: identity in eval/inference mode.
    # GraphConv 2: relu(A @ (H @ W2) + b2)
    h = jnp.dot(h, w2_ref[...], preferred_element_type=jnp.float32)
    h = jnp.dot(a, h.astype(jnp.bfloat16), preferred_element_type=jnp.float32)
    h = jnp.maximum(h + b2_ref[...], 0.0).astype(jnp.bfloat16)
    # Linear head + softmax; pad classes carry a -1e30 bias -> exactly 0 prob.
    logits = (jnp.dot(h, wp_ref[...], preferred_element_type=jnp.float32)
              + bp_ref[...])
    o_ref[...] = _softmax_rows(logits)


def _layer_kernel(a_ref, x_ref, w_ref, b_ref, o_ref, acc_ref):
    """Fused GraphConv tile: o = relu(A @ (X @ W) + b); reduction over axis 1."""
    k = pl.program_id(1)

    @pl.when(k == 0)
    def _():
        acc_ref[...] = jnp.zeros_like(acc_ref)

    # Transform fused into the reduction loop: H k-tile computed on the fly
    # from the VMEM-resident weight (H never touches HBM).
    hk = jnp.dot(x_ref[...], w_ref[...],
                 preferred_element_type=jnp.float32).astype(jnp.bfloat16)
    acc_ref[...] += jnp.dot(a_ref[...], hk, preferred_element_type=jnp.float32)

    @pl.when(k == pl.num_programs(1) - 1)
    def _():
        o_ref[...] = jnp.maximum(acc_ref[...] + b_ref[...], 0.0).astype(o_ref.dtype)


def _layer_pred_kernel(a_ref, x_ref, w_ref, b_ref, wp_ref, bp_ref,
                       o_ref, acc_ref):
    """Last GraphConv fused with the prediction head + softmax."""
    k = pl.program_id(1)

    @pl.when(k == 0)
    def _():
        acc_ref[...] = jnp.zeros_like(acc_ref)

    hk = jnp.dot(x_ref[...], w_ref[...],
                 preferred_element_type=jnp.float32).astype(jnp.bfloat16)
    acc_ref[...] += jnp.dot(a_ref[...], hk, preferred_element_type=jnp.float32)

    @pl.when(k == pl.num_programs(1) - 1)
    def _():
        h = jnp.maximum(acc_ref[...] + b_ref[...], 0.0).astype(jnp.bfloat16)
        logits = (jnp.dot(h, wp_ref[...], preferred_element_type=jnp.float32)
                  + bp_ref[...])
        o_ref[...] = _softmax_rows(logits)


# ------------------------- pallas_call wrappers ------------------------------


def _run_fused_small(a, x, w1, b1, w2, b2, wp, bp):
    n = a.shape[0]
    lab_p = wp.shape[1]

    def full(arr):                      # whole array, VMEM-resident
        return pl.BlockSpec(arr.shape, lambda i: (0, 0))

    return pl.pallas_call(
        _fused_small_kernel,
        out_shape=jax.ShapeDtypeStruct((n, lab_p), jnp.float32),
        grid_spec=pltpu.PrefetchScalarGridSpec(
            num_scalar_prefetch=0,
            grid=(1,),
            in_specs=[full(a), full(x), full(w1), full(b1),
                      full(w2), full(b2), full(wp), full(bp)],
            out_specs=pl.BlockSpec((n, lab_p), lambda i: (0, 0)),
        ),
        compiler_params=pltpu.CompilerParams(
            dimension_semantics=("arbitrary",),
            vmem_limit_bytes=_VMEM_LIMIT,
        ),
    )(a, x, w1, b1, w2, b2, wp, bp)


def _run_layer(a, x, w, b, tm, tk):
    n = a.shape[0]
    f_in = x.shape[1]
    f_out = w.shape[1]
    return pl.pallas_call(
        _layer_kernel,
        out_shape=jax.ShapeDtypeStruct((n, f_out), jnp.bfloat16),
        grid_spec=pltpu.PrefetchScalarGridSpec(
            num_scalar_prefetch=0,
            grid=(n // tm, n // tk),
            in_specs=[
                pl.BlockSpec((tm, tk), lambda i, k: (i, k)),       # A_hat tile
                pl.BlockSpec((tk, f_in), lambda i, k: (k, 0)),     # X k-tile
                pl.BlockSpec((f_in, f_out), lambda i, k: (0, 0)),  # W (resident)
                pl.BlockSpec((1, f_out), lambda i, k: (0, 0)),     # bias row
            ],
            out_specs=pl.BlockSpec((tm, f_out), lambda i, k: (i, 0)),
            scratch_shapes=[pltpu.VMEM((tm, f_out), jnp.float32)],
        ),
        compiler_params=pltpu.CompilerParams(
            dimension_semantics=("parallel", "arbitrary"),
            vmem_limit_bytes=_VMEM_LIMIT,
        ),
    )(a, x, w, b)


def _run_layer_pred(a, x, w, b, wp, bp, tm, tk):
    n = a.shape[0]
    f_in = x.shape[1]
    f_out = w.shape[1]
    lab_p = wp.shape[1]
    return pl.pallas_call(
        _layer_pred_kernel,
        out_shape=jax.ShapeDtypeStruct((n, lab_p), jnp.float32),
        grid_spec=pltpu.PrefetchScalarGridSpec(
            num_scalar_prefetch=0,
            grid=(n // tm, n // tk),
            in_specs=[
                pl.BlockSpec((tm, tk), lambda i, k: (i, k)),        # A_hat tile
                pl.BlockSpec((tk, f_in), lambda i, k: (k, 0)),      # H1 k-tile
                pl.BlockSpec((f_in, f_out), lambda i, k: (0, 0)),   # W2
                pl.BlockSpec((1, f_out), lambda i, k: (0, 0)),      # b2
                pl.BlockSpec((f_out, lab_p), lambda i, k: (0, 0)),  # Wp
                pl.BlockSpec((1, lab_p), lambda i, k: (0, 0)),      # bp
            ],
            out_specs=pl.BlockSpec((tm, lab_p), lambda i, k: (i, 0)),
            scratch_shapes=[pltpu.VMEM((tm, f_out), jnp.float32)],
        ),
        compiler_params=pltpu.CompilerParams(
            dimension_semantics=("parallel", "arbitrary"),
            vmem_limit_bytes=_VMEM_LIMIT,
        ),
    )(a, x, w, b, wp, bp)


def gcn_forward(a_hat, x, w1, b1, w2, b2, wp, bp):
    """softmax(Linear(relu(A @ (relu(A @ (X W1) + b1) W2) + b2))) -- eval mode."""
    n = x.shape[0]
    n_labels = wp.shape[1]

    f_in_p = _round_up(x.shape[1], _LANE)
    hid_p = _round_up(w1.shape[1], _LANE)
    out_p = _round_up(w2.shape[1], _LANE)
    lab_p = _round_up(n_labels, _LANE)

    small = n <= _SMALL_MAX
    if small:
        n_pad = _round_up(n, 8)
    else:
        # Tile so grid(0) = n_pad // tile >= 2 (v7x has 2 TensorCores) and the
        # double-buffered A tiles stay well under v7x's 64 MiB VMEM.
        tile = 1024 if n <= 4096 else 2048
        n_pad = _round_up(n, tile)

    # Pad to lane-dense shapes; bf16 for the big matmul operands.
    # TODO(synk): int8 (v5e/v6e) / fp8 (v7x) A_hat compression and a
    # block-sparse scalar-prefetch reduction are the next HBM levers; A_hat is
    # kept bf16 here for f32-reference parity.
    a_p = _pad2(a_hat, n_pad, n_pad).astype(jnp.bfloat16)
    x_p = _pad2(x, n_pad, f_in_p).astype(jnp.bfloat16)
    w1_p = _pad2(w1, f_in_p, hid_p).astype(jnp.bfloat16)
    b1_p = _pad2(b1, 1, hid_p).astype(jnp.float32)
    w2_p = _pad2(w2, hid_p, out_p).astype(jnp.bfloat16)
    b2_p = _pad2(b2, 1, out_p).astype(jnp.float32)
    wp_p = _pad2(wp, out_p, lab_p).astype(jnp.bfloat16)
    bp_p = _pad2(bp, 1, lab_p, fill=_NEG_INF).astype(jnp.float32)

    if small:
        probs = _run_fused_small(a_p, x_p, w1_p, b1_p, w2_p, b2_p, wp_p, bp_p)
    else:
        # GraphConv 1 (transform fused into aggregation); dropout = identity.
        h1 = _run_layer(a_p, x_p, w1_p, b1_p, tile, tile)
        # GraphConv 2 fused with the Linear head + softmax.
        probs = _run_layer_pred(a_p, h1, w2_p, b2_p, wp_p, bp_p, tile, tile)

    return probs[:n, :n_labels]


def _reference_forward(a_hat, x, w1, b1, w2, b2, wp, bp):
    h = jnp.maximum(a_hat @ (x @ w1) + b1, 0.0)
    h = jnp.maximum(a_hat @ (h @ w2) + b2, 0.0)
    return jax.nn.softmax(h @ wp + bp, axis=-1)


if __name__ == "__main__":
    IN_FEATS, HIDDEN, OUT_FEATS, N_LABELS = 16, 32, 16, 8

    def make_problem(n):
        key = jax.random.PRNGKey(0)
        k_adj, k_x, k_w1, k_b1, k_w2, k_b2, k_wp, k_bp = jax.random.split(key, 8)
        # Deterministic undirected graph, self-loops removed (as in the spec).
        adj = (jax.random.uniform(k_adj, (n, n)) < 0.1).astype(jnp.float32)
        adj = jnp.maximum(adj, adj.T)
        adj = adj * (1.0 - jnp.eye(n, dtype=jnp.float32))
        deg = jnp.maximum(jnp.sum(adj, axis=1), 1.0)        # DGL clamps deg >= 1
        dis = 1.0 / jnp.sqrt(deg)
        a_hat = dis[:, None] * adj * dis[None, :]
        x = jax.random.normal(k_x, (n, IN_FEATS), dtype=jnp.float32)
        w1 = 0.1 * jax.random.normal(k_w1, (IN_FEATS, HIDDEN), dtype=jnp.float32)
        b1 = 0.1 * jax.random.normal(k_b1, (1, HIDDEN), dtype=jnp.float32)
        w2 = 0.1 * jax.random.normal(k_w2, (HIDDEN, OUT_FEATS), dtype=jnp.float32)
        b2 = 0.1 * jax.random.normal(k_b2, (1, OUT_FEATS), dtype=jnp.float32)
        wp = 0.1 * jax.random.normal(k_wp, (OUT_FEATS, N_LABELS), dtype=jnp.float32)
        bp = 0.1 * jax.random.normal(k_bp, (1, N_LABELS), dtype=jnp.float32)
        return (a_hat, x, w1, b1, w2, b2, wp, bp)

    # Exercise both paths: small (one fully-fused pallas_call) and large
    # (two fused row-tiled kernels with tile=1024, grid(0)=2).
    for n in (64, 1200):
        args = make_problem(n)
        out = jax.block_until_ready(gcn_forward(*args))
        assert out.shape == (n, N_LABELS)
        assert bool(jnp.allclose(jnp.sum(out, axis=1), 1.0, atol=1e-3))
        ref = _reference_forward(*args)
        assert bool(jnp.allclose(out, ref, atol=3e-2, rtol=3e-2))

    print("KERNEL_OK")
</pallas_src>

<mosaic_0001>
module attributes {stable_mosaic.version = 11 : i64} {
  func.func @_fused_small_kernel(%arg0: i32, %arg1: memref<64x64xbf16, #tpu.memory_space<vmem>>, %arg2: memref<64x128xbf16, #tpu.memory_space<vmem>>, %arg3: memref<128x128xbf16, #tpu.memory_space<vmem>>, %arg4: memref<1x128xf32, #tpu.memory_space<vmem>>, %arg5: memref<128x128xbf16, #tpu.memory_space<vmem>>, %arg6: memref<1x128xf32, #tpu.memory_space<vmem>>, %arg7: memref<128x128xbf16, #tpu.memory_space<vmem>>, %arg8: memref<1x128xf32, #tpu.memory_space<vmem>>, %arg9: memref<64x128xf32, #tpu.memory_space<vmem>>) attributes {dimension_semantics = [#tpu.dimension_semantics<arbitrary>], iteration_bounds = array<i64: 1>, scalar_prefetch = 0 : i64, scratch_operands = 0 : i64, tpu.core_type = #tpu.core_type<tc>, window_params = [{pipeline_mode = #tpu.pipeline_mode<synchronous>, transform_indices = @transform_0, window_bounds = array<i64: 64, 64>}, {pipeline_mode = #tpu.pipeline_mode<synchronous>, transform_indices = @transform_1, window_bounds = array<i64: 64, 128>}, {pipeline_mode = #tpu.pipeline_mode<synchronous>, transform_indices = @transform_2, window_bounds = array<i64: 128, 128>}, {pipeline_mode = #tpu.pipeline_mode<synchronous>, transform_indices = @transform_3, window_bounds = array<i64: 1, 128>}, {pipeline_mode = #tpu.pipeline_mode<synchronous>, transform_indices = @transform_4, window_bounds = array<i64: 128, 128>}, {pipeline_mode = #tpu.pipeline_mode<synchronous>, transform_indices = @transform_5, window_bounds = array<i64: 1, 128>}, {pipeline_mode = #tpu.pipeline_mode<synchronous>, transform_indices = @transform_6, window_bounds = array<i64: 128, 128>}, {pipeline_mode = #tpu.pipeline_mode<synchronous>, transform_indices = @transform_7, window_bounds = array<i64: 1, 128>}, {pipeline_mode = #tpu.pipeline_mode<synchronous>, transform_indices = @transform_8, window_bounds = array<i64: 64, 128>}]} {
    %c0 = arith.constant 0 : index
    %c0_0 = arith.constant 0 : index
    %0 = vector.load %arg1[%c0, %c0_0] : memref<64x64xbf16, #tpu.memory_space<vmem>>, vector<64x64xbf16>
    %c0_1 = arith.constant 0 : index
    %c0_2 = arith.constant 0 : index
    %1 = vector.load %arg2[%c0_1, %c0_2] : memref<64x128xbf16, #tpu.memory_space<vmem>>, vector<64x128xbf16>
    %c0_3 = arith.constant 0 : index
    %c0_4 = arith.constant 0 : index
    %2 = vector.load %arg3[%c0_3, %c0_4] : memref<128x128xbf16, #tpu.memory_space<vmem>>, vector<128x128xbf16>
    %cst = arith.constant dense<0.000000e+00> : vector<64x128xf32>
    %3 = tpu.matmul %1, %2, %cst {dimension_numbers = #tpu.dot_dimension_numbers<[1], [0], [0], [1], [0, 0, 1, 1], [], []>} : vector<64x128xbf16>, vector<128x128xbf16>, vector<64x128xf32> -> vector<64x128xf32>
    %4 = arith.truncf %3 : vector<64x128xf32> to vector<64x128xbf16>
    %cst_5 = arith.constant dense<0.000000e+00> : vector<64x128xf32>
    %5 = tpu.matmul %0, %4, %cst_5 {dimension_numbers = #tpu.dot_dimension_numbers<[1], [0], [0], [1], [0, 0, 1, 1], [], []>} : vector<64x64xbf16>, vector<64x128xbf16>, vector<64x128xf32> -> vector<64x128xf32>
    %c0_6 = arith.constant 0 : index
    %c0_7 = arith.constant 0 : index
    %6 = vector.load %arg4[%c0_6, %c0_7] : memref<1x128xf32, #tpu.memory_space<vmem>>, vector<1x128xf32>
    %7 = vector.broadcast %6 : vector<1x128xf32> to vector<64x128xf32>
    %8 = arith.addf %5, %7 : vector<64x128xf32>
    %cst_8 = arith.constant 0.000000e+00 : f32
    %9 = vector.broadcast %cst_8 : f32 to vector<64x128xf32>
    %10 = arith.maximumf %8, %9 : vector<64x128xf32>
    %11 = arith.truncf %10 : vector<64x128xf32> to vector<64x128xbf16>
    %c0_9 = arith.constant 0 : index
    %c0_10 = arith.constant 0 : index
    %12 = vector.load %arg5[%c0_9, %c0_10] : memref<128x128xbf16, #tpu.memory_space<vmem>>, vector<128x128xbf16>
    %cst_11 = arith.constant dense<0.000000e+00> : vector<64x128xf32>
    %13 = tpu.matmul %11, %12, %cst_11 {dimension_numbers = #tpu.dot_dimension_numbers<[1], [0], [0], [1], [0, 0, 1, 1], [], []>} : vector<64x128xbf16>, vector<128x128xbf16>, vector<64x128xf32> -> vector<64x128xf32>
    %14 = arith.truncf %13 : vector<64x128xf32> to vector<64x128xbf16>
    %cst_12 = arith.constant dense<0.000000e+00> : vector<64x128xf32>
    %15 = tpu.matmul %0, %14, %cst_12 {dimension_numbers = #tpu.dot_dimension_numbers<[1], [0], [0], [1], [0, 0, 1, 1], [], []>} : vector<64x64xbf16>, vector<64x128xbf16>, vector<64x128xf32> -> vector<64x128xf32>
    %c0_13 = arith.constant 0 : index
    %c0_14 = arith.constant 0 : index
    %16 = vector.load %arg6[%c0_13, %c0_14] : memref<1x128xf32, #tpu.memory_space<vmem>>, vector<1x128xf32>
    %17 = vector.broadcast %16 : vector<1x128xf32> to vector<64x128xf32>
    %18 = arith.addf %15, %17 : vector<64x128xf32>
    %cst_15 = arith.constant 0.000000e+00 : f32
    %19 = vector.broadcast %cst_15 : f32 to vector<64x128xf32>
    %20 = arith.maximumf %18, %19 : vector<64x128xf32>
    %21 = arith.truncf %20 : vector<64x128xf32> to vector<64x128xbf16>
    %c0_16 = arith.constant 0 : index
    %c0_17 = arith.constant 0 : index
    %22 = vector.load %arg7[%c0_16, %c0_17] : memref<128x128xbf16, #tpu.memory_space<vmem>>, vector<128x128xbf16>
    %cst_18 = arith.constant dense<0.000000e+00> : vector<64x128xf32>
    %23 = tpu.matmul %21, %22, %cst_18 {dimension_numbers = #tpu.dot_dimension_numbers<[1], [0], [0], [1], [0, 0, 1, 1], [], []>} : vector<64x128xbf16>, vector<128x128xbf16>, vector<64x128xf32> -> vector<64x128xf32>
    %c0_19 = arith.constant 0 : index
    %c0_20 = arith.constant 0 : index
    %24 = vector.load %arg8[%c0_19, %c0_20] : memref<1x128xf32, #tpu.memory_space<vmem>>, vector<1x128xf32>
    %25 = vector.broadcast %24 : vector<1x128xf32> to vector<64x128xf32>
    %26 = arith.addf %23, %25 : vector<64x128xf32>
    %cst_21 = arith.constant dense<0xFF800000> : vector<64xf32>
    %27 = vector.multi_reduction <maximumf>, %26, %cst_21 [1] : vector<64x128xf32> to vector<64xf32>
    %28 = vector.shape_cast %27 : vector<64xf32> to vector<64x1xf32>
    %29 = vector.broadcast %28 : vector<64x1xf32> to vector<64x128xf32>
    %30 = arith.subf %26, %29 : vector<64x128xf32>
    %31 = math.exp %30 : vector<64x128xf32>
    %cst_22 = arith.constant dense<0.000000e+00> : vector<64xf32>
    %32 = vector.multi_reduction <add>, %31, %cst_22 [1] : vector<64x128xf32> to vector<64xf32>
    %33 = vector.shape_cast %32 : vector<64xf32> to vector<64x1xf32>
    %34 = vector.broadcast %33 : vector<64x1xf32> to vector<64x128xf32>
    %35 = arith.divf %31, %34 : vector<64x128xf32>
    %c0_23 = arith.constant 0 : index
    %c0_24 = arith.constant 0 : index
    %36 = vector.load %arg9[%c0_23, %c0_24] : memref<64x128xf32, #tpu.memory_space<vmem>>, vector<64x128xf32>
    tpu.vector_store %arg9[%c0_23, %c0_24], %35 {strides = array<i32>} : memref<64x128xf32, #tpu.memory_space<vmem>>, vector<64x128xf32>,
    return
  }
  func.func @transform_0(%arg0: i32) -> (i32, i32) {
    %c0_i32 = arith.constant 0 : i32
    %c0_i32_0 = arith.constant 0 : i32
    %c0_i32_1 = arith.constant 0 : i32
    return %c0_i32, %c0_i32_0 : i32, i32
  }
  func.func @transform_1(%arg0: i32) -> (i32, i32) {
    %c0_i32 = arith.constant 0 : i32
    %c0_i32_0 = arith.constant 0 : i32
    %c0_i32_1 = arith.constant 0 : i32
    return %c0_i32, %c0_i32_0 : i32, i32
  }
  func.func @transform_2(%arg0: i32) -> (i32, i32) {
    %c0_i32 = arith.constant 0 : i32
    %c0_i32_0 = arith.constant 0 : i32
    %c0_i32_1 = arith.constant 0 : i32
    return %c0_i32, %c0_i32_0 : i32, i32
  }
  func.func @transform_3(%arg0: i32) -> (i32, i32) {
    %c0_i32 = arith.constant 0 : i32
    %c0_i32_0 = arith.constant 0 : i32
    %c0_i32_1 = arith.constant 0 : i32
    return %c0_i32, %c0_i32_0 : i32, i32
  }
  func.func @transform_4(%arg0: i32) -> (i32, i32) {
    %c0_i32 = arith.constant 0 : i32
    %c0_i32_0 = arith.constant 0 : i32
    %c0_i32_1 = arith.constant 0 : i32
    return %c0_i32, %c0_i32_0 : i32, i32
  }
  func.func @transform_5(%arg0: i32) -> (i32, i32) {
    %c0_i32 = arith.constant 0 : i32
    %c0_i32_0 = arith.constant 0 : i32
    %c0_i32_1 = arith.constant 0 : i32
    return %c0_i32, %c0_i32_0 : i32, i32
  }
  func.func @transform_6(%arg0: i32) -> (i32, i32) {
    %c0_i32 = arith.constant 0 : i32
    %c0_i32_0 = arith.constant 0 : i32
    %c0_i32_1 = arith.constant 0 : i32
    return %c0_i32, %c0_i32_0 : i32, i32
  }
  func.func @transform_7(%arg0: i32) -> (i32, i32) {
    %c0_i32 = arith.constant 0 : i32
    %c0_i32_0 = arith.constant 0 : i32
    %c0_i32_1 = arith.constant 0 : i32
    return %c0_i32, %c0_i32_0 : i32, i32
  }
  func.func @transform_8(%arg0: i32) -> (i32, i32) {
    %c0_i32 = arith.constant 0 : i32
    %c0_i32_0 = arith.constant 0 : i32
    %c0_i32_1 = arith.constant 0 : i32
    return %c0_i32, %c0_i32_0 : i32, i32
  }
}

</mosaic_0001>

<llo_original>
// kernel: tpu_custom_call.1
$region0: #{tpu_custom_call.1}
  #allocation0 [shape = 'u32[]', space=smem, size = 0x4, offset = 0x4, fixed_abs, tag = 'smem constant byte address 0x4 - core index']
  #allocation1 [shape = 'u32[72,128]{1,0:T(1,128)}', space=vmem, size = 0x9000, scoped, tag = 'internal scratch']
  %s0 = inlined_call_operand.hbm [shape: bf16[64,64], index: 0, kind: input, shape index: {}]
  %s1 = inlined_call_operand.hbm [shape: bf16[64,128], index: 1, kind: input, shape index: {}]
  %s2 = inlined_call_operand.hbm [shape: bf16[128,128], index: 2, kind: input, shape index: {}]
  %s3 = inlined_call_operand.vmem [shape: f32[1,128], index: 3, kind: input, shape index: {}]
  %s4 = inlined_call_operand.hbm [shape: bf16[128,128], index: 4, kind: input, shape index: {}]
  %s5 = inlined_call_operand.vmem [shape: f32[1,128], index: 5, kind: input, shape index: {}]
  %s6 = inlined_call_operand.hbm [shape: bf16[128,128], index: 6, kind: input, shape index: {}]
  %s7 = inlined_call_operand.vmem [shape: f32[1,128], index: 7, kind: input, shape index: {}]
  %s8 = inlined_call_operand.hbm [shape: f32[64,128], index: 8, kind: output, shape index: {}]
  %s9 = sld [smem:[#allocation0]]
  $region62: #{tpu_custom_call.1} parent=0
    _
  %s11 = ssub.s32 1, %s9
  %s12 = scalar_select 0, %s11, %s9
  $region1: #{tpu_custom_call.1} parent=0
    #allocation2 [shape = 'u8[16384]{0}', space=vmem, size = 0x4000, scoped, tag = 'input window, operand 0, single buffered']
    #allocation3 [shape = 's32[1]{0}', space=sflag, size = 0x4, scoped, tag = 'scoped memory for tpu_custom_call.1']
    #allocation4 [shape = 's32[1]{0}', space=sflag, size = 0x4, scoped, tag = 'scoped memory for tpu_custom_call.1']
    #allocation5 [shape = 'u8[16384]{0}', space=vmem, size = 0x4000, scoped, tag = 'input window, operand 1, single buffered']
    #allocation6 [shape = 's32[1]{0}', space=sflag, size = 0x4, scoped, tag = 'scoped memory for tpu_custom_call.1']
    #allocation7 [shape = 'u8[32768]{0}', space=vmem, size = 0x8000, scoped, tag = 'input window, operand 2, single buffered']
    #allocation8 [shape = 'u8[32768]{0}', space=vmem, size = 0x8000, scoped, tag = 'input window, operand 4, single buffered']
    #allocation9 [shape = 's32[1]{0}', space=sflag, size = 0x4, scoped, tag = 'scoped memory for tpu_custom_call.1']
    #allocation10 [shape = 'u8[32768]{0}', space=vmem, size = 0x8000, scoped, tag = 'input window, operand 6, single buffered']
    #allocation11 [shape = 'u8[32768]{0}', space=vmem, size = 0x8000, scoped, tag = 'output window, operand 0, single buffered']
    %13 = vsyncpa [#allocation3], 0
    %14 = vsyncpa [#allocation6], 0
    %15 = vsyncpa [#allocation9], 0
    %16 = vsyncpa [#allocation4], 0
    // Predicated region
    $region2: #{tpu_custom_call.1} parent=1 // pred_check
      _
    $region3: #{tpu_custom_call.1} parent=1 // pred_check_branch
      %18 = sbr.rel (0) target = $region5
    $region4: #{tpu_custom_call.1} parent=1 // pred_region
      %20 = vsyncadd [#allocation3], 0
      %s21 = sshll.u32 %s0, 4
      %s22 = int_to_ptr.hbm [resolvable:$true] %s21
      %s23 = sshll.u32 [#allocation2], 4
      %s24 = int_to_ptr.vmem [resolvable:$true] %s23
      %29 = dma.hbm_to_vmem [thread:$0]  %s22, 512, %s24, [#allocation3], 64, 64, 4
    $region5: #{tpu_custom_call.1} parent=1 // pred_fallthru
      _
    // Predicated region
    $region6: #{tpu_custom_call.1} parent=1 // pred_check
      _
    $region7: #{tpu_custom_call.1} parent=1 // pred_check_branch
      %31 = sbr.rel (0) target = $region9
    $region8: #{tpu_custom_call.1} parent=1 // pred_region
      %33 = vsyncadd [#allocation6], 0
      %s34 = sshll.u32 %s1, 4
      %s35 = int_to_ptr.hbm [resolvable:$true] %s34
      %s36 = sshll.u32 [#allocation5], 4
      %s37 = int_to_ptr.vmem [resolvable:$true] %s36
      %42 = dma.hbm_to_vmem [thread:$0]  %s35, 512, %s37, [#allocation6], 64, 64, 4
    $region9: #{tpu_custom_call.1} parent=1 // pred_fallthru
      _
    // Predicated region
    $region10: #{tpu_custom_call.1} parent=1 // pred_check
      _
    $region11: #{tpu_custom_call.1} parent=1 // pred_check_branch
      %44 = sbr.rel (0) target = $region13
    $region12: #{tpu_custom_call.1} parent=1 // pred_region
      %46 = vsyncadd [#allocation6], 0
      %s47 = sshll.u32 %s2, 4
      %s48 = int_to_ptr.hbm [resolvable:$true] %s47
      %s49 = sshll.u32 [#allocation7], 4
      %s50 = int_to_ptr.vmem [resolvable:$true] %s49
      %55 = dma.hbm_to_vmem [thread:$0]  %s48, 1024, %s50, [#allocation6], 64, 64, 4
    $region13: #{tpu_custom_call.1} parent=1 // pred_fallthru
      _
    // Predicated region
    $region14: #{tpu_custom_call.1} parent=1 // pred_check
      _
    $region15: #{tpu_custom_call.1} parent=1 // pred_check_branch
      %57 = sbr.rel (0) target = $region17
    $region16: #{tpu_custom_call.1} parent=1 // pred_region
      _
    $region17: #{tpu_custom_call.1} parent=1 // pred_fallthru
      _
    // Predicated region
    $region18: #{tpu_custom_call.1} parent=1 // pred_check
      _
    $region19: #{tpu_custom_call.1} parent=1 // pred_check_branch
      %59 = sbr.rel (0) target = $region21
    $region20: #{tpu_custom_call.1} parent=1 // pred_region
      %61 = vsyncadd [#allocation9], 0
      %s62 = sshll.u32 %s4, 4
      %s63 = int_to_ptr.hbm [resolvable:$true] %s62
      %s64 = sshll.u32 [#allocation8], 4
      %s65 = int_to_ptr.vmem [resolvable:$true] %s64
      %70 = dma.hbm_to_vmem [thread:$0]  %s63, 1024, %s65, [#allocation9], 64, 64, 4
    $region21: #{tpu_custom_call.1} parent=1 // pred_fallthru
      _
    // Predicated region
    $region22: #{tpu_custom_call.1} parent=1 // pred_check
      _
    $region23: #{tpu_custom_call.1} parent=1 // pred_check_branch
      %72 = sbr.rel (0) target = $region25
    $region24: #{tpu_custom_call.1} parent=1 // pred_region
      _
    $region25: #{tpu_custom_call.1} parent=1 // pred_fallthru
      _
    // Predicated region
    $region26: #{tpu_custom_call.1} parent=1 // pred_check
      _
    $region27: #{tpu_custom_call.1} parent=1 // pred_check_branch
      %74 = sbr.rel (0) target = $region29
    $region28: #{tpu_custom_call.1} parent=1 // pred_region
      %76 = vsyncadd [#allocation9], 0
      %s77 = sshll.u32 %s6, 4
      %s78 = int_to_ptr.hbm [resolvable:$true] %s77
      %s79 = sshll.u32 [#allocation10], 4
      %s80 = int_to_ptr.vmem [resolvable:$true] %s79
      %85 = dma.hbm_to_vmem [thread:$0]  %s78, 1024, %s80, [#allocation9], 64, 64, 4
    $region29: #{tpu_custom_call.1} parent=1 // pred_fallthru
      _
    // Predicated region
    $region30: #{tpu_custom_call.1} parent=1 // pred_check
      _
    $region31: #{tpu_custom_call.1} parent=1 // pred_check_branch
      %87 = sbr.rel (0) target = $region33
    $region32: #{tpu_custom_call.1} parent=1 // pred_region
      _
    $region33: #{tpu_custom_call.1} parent=1 // pred_fallthru
      _
    // Predicated region
    $region34: #{tpu_custom_call.1} parent=1 // pred_check
      _
    $region35: #{tpu_custom_call.1} parent=1 // pred_check_branch
      %89 = sbr.rel (0) target = $region37
    $region36: #{tpu_custom_call.1} parent=1 // pred_region
      %91 = dma.done [#allocation3], 512
    $region37: #{tpu_custom_call.1} parent=1 // pred_fallthru
      _
    // Predicated region
    $region38: #{tpu_custom_call.1} parent=1 // pred_check
      _
    $region39: #{tpu_custom_call.1} parent=1 // pred_check_branch
      %93 = sbr.rel (0) target = $region41
    $region40: #{tpu_custom_call.1} parent=1 // pred_region
      %95 = dma.done [#allocation6], 512
    $region41: #{tpu_custom_call.1} parent=1 // pred_fallthru
      _
    // Predicated region
    $region42: #{tpu_custom_call.1} parent=1 // pred_check
      _
    $region43: #{tpu_custom_call.1} parent=1 // pred_check_branch
      %97 = sbr.rel (0) target = $region45
    $region44: #{tpu_custom_call.1} parent=1 // pred_region
      %99 = dma.done [#allocation6], 1024
    $region45: #{tpu_custom_call.1} parent=1 // pred_fallthru
      _
    // Predicated region
    $region46: #{tpu_custom_call.1} parent=1 // pred_check
      _
    $region47: #{tpu_custom_call.1} parent=1 // pred_check_branch
      %101 = sbr.rel (0) target = $region49
    $region48: #{tpu_custom_call.1} parent=1 // pred_region
      %103 = dma.done [#allocation9], 1024
    $region49: #{tpu_custom_call.1} parent=1 // pred_fallthru
      _
    // Predicated region
    $region50: #{tpu_custom_call.1} parent=1 // pred_check
      _
    $region51: #{tpu_custom_call.1} parent=1 // pred_check_branch
      %105 = sbr.rel (0) target = $region53
    $region52: #{tpu_custom_call.1} parent=1 // pred_region
      %107 = dma.done [#allocation9], 1024
    $region53: #{tpu_custom_call.1} parent=1 // pred_fallthru
      _
    %v109 = vld [vmem:[#allocation2] sm:$0xf]
    %v110 = vld [vmem:[#allocation2 + $0x4] sm:$0xf]
    %v111 = vld [vmem:[#allocation2 + $0x8] sm:$0xf]
    %v112 = vld [vmem:[#allocation2 + $0xc] sm:$0xf]
    %v113 = vld [vmem:[#allocation2 + $0x10] sm:$0xf]
    %v114 = vld [vmem:[#allocation2 + $0x14] sm:$0xf]
    %v115 = vld [vmem:[#allocation2 + $0x18] sm:$0xf]
    %v116 = vld [vmem:[#allocation2 + $0x1c] sm:$0xf]
    %v117 = vld [vmem:[#allocation5] sm:$0xf]
    %v118 = vld [vmem:[#allocation5 + $0x4] sm:$0xf]
    %v119 = vld [vmem:[#allocation5 + $0x8] sm:$0xf]
    %v120 = vld [vmem:[#allocation5 + $0xc] sm:$0xf]
    %v121 = vld [vmem:[#allocation5 + $0x10] sm:$0xf]
    %v122 = vld [vmem:[#allocation5 + $0x14] sm:$0xf]
    %v123 = vld [vmem:[#allocation5 + $0x18] sm:$0xf]
    %v124 = vld [vmem:[#allocation5 + $0x1c] sm:$0xf]
    %v125 = vld [vmem:[#allocation7] sm:$0xf]
    %v126 = vld [vmem:[#allocation7 + $0x4] sm:$0xf]
    %v127 = vld [vmem:[#allocation7 + $0x8] sm:$0xf]
    %v128 = vld [vmem:[#allocation7 + $0xc] sm:$0xf]
    %v129 = vld [vmem:[#allocation7 + $0x10] sm:$0xf]
    %v130 = vld [vmem:[#allocation7 + $0x14] sm:$0xf]
    %v131 = vld [vmem:[#allocation7 + $0x18] sm:$0xf]
    %v132 = vld [vmem:[#allocation7 + $0x1c] sm:$0xf]
    %v133 = vld [vmem:[#allocation7 + $0x20] sm:$0xf]
    %v134 = vld [vmem:[#allocation7 + $0x24] sm:$0xf]
    %v135 = vld [vmem:[#allocation7 + $0x28] sm:$0xf]
    %v136 = vld [vmem:[#allocation7 + $0x2c] sm:$0xf]
    %v137 = vld [vmem:[#allocation7 + $0x30] sm:$0xf]
    %v138 = vld [vmem:[#allocation7 + $0x34] sm:$0xf]
    %v139 = vld [vmem:[#allocation7 + $0x38] sm:$0xf]
    %v140 = vld [vmem:[#allocation7 + $0x3c] sm:$0xf]
    %v149 = vunpack.c.l.b16 %v117
    %v150 = vunpack.c.l.b16 %v118
    %v151 = vunpack.c.l.b16 %v119
    %v152 = vunpack.c.l.b16 %v120
    %v153 = vunpack.c.l.b16 %v121
    %v154 = vunpack.c.l.b16 %v122
    %v155 = vunpack.c.l.b16 %v123
    %v156 = vunpack.c.l.b16 %v124
    %v157 = vpack.c.b16 %v150, %v149
    %v158 = vpack.c.b16 %v152, %v151
    %v159 = vpack.c.b16 %v154, %v153
    %v160 = vpack.c.b16 %v156, %v155
    %v181 = vunpack.c.l.b16 %v125
    %v182 = vunpack.c.l.b16 %v126
    %v183 = vunpack.c.l.b16 %v127
    %v184 = vunpack.c.l.b16 %v128
    %v185 = vunpack.c.l.b16 %v129
    %v186 = vunpack.c.l.b16 %v130
    %v187 = vunpack.c.l.b16 %v131
    %v188 = vunpack.c.l.b16 %v132
    %v189 = vunpack.c.l.b16 %v133
    %v190 = vunpack.c.l.b16 %v134
    %v191 = vunpack.c.l.b16 %v135
    %v192 = vunpack.c.l.b16 %v136
    %v193 = vunpack.c.l.b16 %v137
    %v194 = vunpack.c.l.b16 %v138
    %v195 = vunpack.c.l.b16 %v139
    %v196 = vunpack.c.l.b16 %v140
    %v197 = vpack.c.b16 %v182, %v181
    %v198 = vpack.c.b16 %v184, %v183
    %v199 = vpack.c.b16 %v186, %v185
    %v200 = vpack.c.b16 %v188, %v187
    %v201 = vpack.c.b16 %v190, %v189
    %v202 = vpack.c.b16 %v192, %v191
    %v203 = vpack.c.b16 %v194, %v193
    %v204 = vpack.c.b16 %v196, %v195
    %213 = vmatpush.bf16.msra.mxu0 %v204
    %214 = vmatpush.bf16.msra.mxu0 %v203
    %215 = vmatpush.bf16.msra.mxu0 %v202
    %216 = vmatpush.bf16.msra.mxu0 %v201
    %217 = vmatpush.bf16.msra.mxu0 %v200
    %218 = vmatpush.bf16.msra.mxu0 %v199
    %219 = vmatpush.bf16.msra.mxu0 %v198
    %220 = vmatpush.bf16.msra.mxu0 %v197
    %221 = vmatmul.bf16.gmra.mxu0 %v157
    %v222 = vpop.f32.mrf.mxu0
    %v223 = vadd.f32 0.0, %v222
    %v224 = vpop.f32.mrf.mxu0
    %v225 = vadd.f32 0.0, %v224
    %226 = vmatmul.bf16.gmra.mxu0 %v158
    %v227 = vpop.f32.mrf.mxu0
    %v228 = vadd.f32 0.0, %v227
    %v229 = vpop.f32.mrf.mxu0
    %v230 = vadd.f32 0.0, %v229
    %231 = vmatmul.bf16.gmra.mxu0 %v159
    %v232 = vpop.f32.mrf.mxu0
    %v233 = vadd.f32 0.0, %v232
    %v234 = vpop.f32.mrf.mxu0
    %v235 = vadd.f32 0.0, %v234
    %236 = vmatmul.bf16.gmra.mxu0 %v160
    %v237 = vpop.f32.mrf.mxu0
    %v238 = vadd.f32 0.0, %v237
    %v239 = vpop.f32.mrf.mxu0
    %v240 = vadd.f32 0.0, %v239
    %241 = vdwg.mxu0
    %v242 = vpack.c.bf16 %v225, %v223
    %v243 = vpack.c.bf16 %v230, %v228
    %v244 = vpack.c.bf16 %v235, %v233
    %v245 = vpack.c.bf16 %v240, %v238
    %v246 = vld [vmem:[%s3] sm:$0x1]
    %v248 = vperm.slane %v246, 0
    %v258 = vunpack.c.l.b16 %v109
    %v259 = vunpack.c.l.b16 %v110
    %v260 = vunpack.c.l.b16 %v111
    %v261 = vunpack.c.l.b16 %v112
    %v262 = vunpack.c.l.b16 %v113
    %v263 = vunpack.c.l.b16 %v114
    %v264 = vunpack.c.l.b16 %v115
    %v265 = vunpack.c.l.b16 %v116
    %v266 = vpack.c.b16 %v259, %v258
    %v267 = vpack.c.b16 %v261, %v260
    %v268 = vpack.c.b16 %v263, %v262
    %v269 = vpack.c.b16 %v265, %v264
    %vm270 = vcmask 523264
    %v272 = vsel %vm270, %v266, 0
    %v275 = vsel %vm270, %v267, 0
    %v278 = vsel %vm270, %v268, 0
    %v281 = vsel %vm270, %v269, 0
    %283 = vmatpush.bf16.msra.mxu0 0
    %284 = vmatpush.bf16.msra.mxu0 0
    %285 = vmatpush.bf16.msra.mxu0 0
    %286 = vmatpush.bf16.msra.mxu0 0
    %287 = vmatpush.bf16.msra.mxu0 %v245
    %288 = vmatpush.bf16.msra.mxu0 %v244
    %289 = vmatpush.bf16.msra.mxu0 %v243
    %290 = vmatpush.bf16.msra.mxu0 %v242
    %291 = vmatmul.bf16.gmra.mxu0 %v272
    %v292 = vpop.f32.mrf.mxu0
    %v293 = vadd.f32 %v248, %v292
    %v294 = vpop.f32.mrf.mxu0
    %v295 = vadd.f32 %v248, %v294
    %296 = vmatmul.bf16.gmra.mxu0 %v275
    %v297 = vpop.f32.mrf.mxu0
    %v298 = vadd.f32 %v248, %v297
    %v299 = vpop.f32.mrf.mxu0
    %v300 = vadd.f32 %v248, %v299
    %301 = vmatmul.bf16.gmra.mxu0 %v278
    %v302 = vpop.f32.mrf.mxu0
    %v303 = vadd.f32 %v248, %v302
    %v304 = vpop.f32.mrf.mxu0
    %v305 = vadd.f32 %v248, %v304
    %306 = vmatmul.bf16.gmra.mxu0 %v281
    %v307 = vpop.f32.mrf.mxu0
    %v308 = vadd.f32 %v248, %v307
    %v309 = vpop.f32.mrf.mxu0
    %v310 = vadd.f32 %v248, %v309
    %311 = vdwg.mxu0
    %v312 = vmax.f32 %v293, 0.0
    %v313 = vmax.f32 %v295, 0.0
    %v314 = vmax.f32 %v298, 0.0
    %v315 = vmax.f32 %v300, 0.0
    %v316 = vmax.f32 %v303, 0.0
    %v317 = vmax.f32 %v305, 0.0
    %v318 = vmax.f32 %v308, 0.0
    %v319 = vmax.f32 %v310, 0.0
    %v320 = vpack.c.bf16 %v313, %v312
    %v321 = vpack.c.bf16 %v315, %v314
    %v322 = vpack.c.bf16 %v317, %v316
    %v323 = vpack.c.bf16 %v319, %v318
    %v324 = vld [vmem:[#allocation8] sm:$0xf]
    %v325 = vld [vmem:[#allocation8 + $0x4] sm:$0xf]
    %v326 = vld [vmem:[#allocation8 + $0x8] sm:$0xf]
    %v327 = vld [vmem:[#allocation8 + $0xc] sm:$0xf]
    %v328 = vld [vmem:[#allocation8 + $0x10] sm:$0xf]
    %v329 = vld [vmem:[#allocation8 + $0x14] sm:$0xf]
    %v330 = vld [vmem:[#allocation8 + $0x18] sm:$0xf]
    %v331 = vld [vmem:[#allocation8 + $0x1c] sm:$0xf]
    %v332 = vld [vmem:[#allocation8 + $0x20] sm:$0xf]
    %v333 = vld [vmem:[#allocation8 + $0x24] sm:$0xf]
    %v334 = vld [vmem:[#allocation8 + $0x28] sm:$0xf]
    %v335 = vld [vmem:[#allocation8 + $0x2c] sm:$0xf]
    %v336 = vld [vmem:[#allocation8 + $0x30] sm:$0xf]
    %v337 = vld [vmem:[#allocation8 + $0x34] sm:$0xf]
    %v338 = vld [vmem:[#allocation8 + $0x38] sm:$0xf]
    %v339 = vld [vmem:[#allocation8 + $0x3c] sm:$0xf]
    %v356 = vunpack.c.l.b16 %v324
    %v357 = vunpack.c.l.b16 %v325
    %v358 = vunpack.c.l.b16 %v326
    %v359 = vunpack.c.l.b16 %v327
    %v360 = vunpack.c.l.b16 %v328
    %v361 = vunpack.c.l.b16 %v329
    %v362 = vunpack.c.l.b16 %v330
    %v363 = vunpack.c.l.b16 %v331
    %v364 = vunpack.c.l.b16 %v332
    %v365 = vunpack.c.l.b16 %v333
    %v366 = vunpack.c.l.b16 %v334
    %v367 = vunpack.c.l.b16 %v335
    %v368 = vunpack.c.l.b16 %v336
    %v369 = vunpack.c.l.b16 %v337
    %v370 = vunpack.c.l.b16 %v338
    %v371 = vunpack.c.l.b16 %v339
    %v372 = vpack.c.b16 %v357, %v356
    %v373 = vpack.c.b16 %v359, %v358
    %v374 = vpack.c.b16 %v361, %v360
    %v375 = vpack.c.b16 %v363, %v362
    %v376 = vpack.c.b16 %v365, %v364
    %v377 = vpack.c.b16 %v367, %v366
    %v378 = vpack.c.b16 %v369, %v368
    %v379 = vpack.c.b16 %v371, %v370
    %388 = vmatpush.bf16.msra.mxu0 %v379
    %389 = vmatpush.bf16.msra.mxu0 %v378
    %390 = vmatpush.bf16.msra.mxu0 %v377
    %391 = vmatpush.bf16.msra.mxu0 %v376
    %392 = vmatpush.bf16.msra.mxu0 %v375
    %393 = vmatpush.bf16.msra.mxu0 %v374
    %394 = vmatpush.bf16.msra.mxu0 %v373
    %395 = vmatpush.bf16.msra.mxu0 %v372
    %396 = vmatmul.bf16.gmra.mxu0 %v320
    %v397 = vpop.f32.mrf.mxu0
    %v398 = vadd.f32 0.0, %v397
    %v399 = vpop.f32.mrf.mxu0
    %v400 = vadd.f32 0.0, %v399
    %401 = vmatmul.bf16.gmra.mxu0 %v321
    %v402 = vpop.f32.mrf.mxu0
    %v403 = vadd.f32 0.0, %v402
    %v404 = vpop.f32.mrf.mxu0
    %v405 = vadd.f32 0.0, %v404
    %406 = vmatmul.bf16.gmra.mxu0 %v322
    %v407 = vpop.f32.mrf.mxu0
    %v408 = vadd.f32 0.0, %v407
    %v409 = vpop.f32.mrf.mxu0
    %v410 = vadd.f32 0.0, %v409
    %411 = vmatmul.bf16.gmra.mxu0 %v323
    %v412 = vpop.f32.mrf.mxu0
    %v413 = vadd.f32 0.0, %v412
    %v414 = vpop.f32.mrf.mxu0
    %v415 = vadd.f32 0.0, %v414
    %416 = vdwg.mxu0
    %v417 = vpack.c.bf16 %v400, %v398
    %v418 = vpack.c.bf16 %v405, %v403
    %v419 = vpack.c.bf16 %v410, %v408
    %v420 = vpack.c.bf16 %v415, %v413
    %v421 = vld [vmem:[%s5] sm:$0x1]
    %v423 = vperm.slane %v421, 0
    %425 = vmatpush.bf16.msra.mxu0 0
    %426 = vmatpush.bf16.msra.mxu0 0
    %427 = vmatpush.bf16.msra.mxu0 0
    %428 = vmatpush.bf16.msra.mxu0 0
    %429 = vmatpush.bf16.msra.mxu0 %v420
    %430 = vmatpush.bf16.msra.mxu0 %v419
    %431 = vmatpush.bf16.msra.mxu0 %v418
    %432 = vmatpush.bf16.msra.mxu0 %v417
    %433 = vmatmul.bf16.gmra.mxu0 %v272
    %v434 = vpop.f32.mrf.mxu0
    %v435 = vadd.f32 %v423, %v434
    %v436 = vpop.f32.mrf.mxu0
    %v437 = vadd.f32 %v423, %v436
    %438 = vmatmul.bf16.gmra.mxu0 %v275
    %v439 = vpop.f32.mrf.mxu0
    %v440 = vadd.f32 %v423, %v439
    %v441 = vpop.f32.mrf.mxu0
    %v442 = vadd.f32 %v423, %v441
    %443 = vmatmul.bf16.gmra.mxu0 %v278
    %v444 = vpop.f32.mrf.mxu0
    %v445 = vadd.f32 %v423, %v444
    %v446 = vpop.f32.mrf.mxu0
    %v447 = vadd.f32 %v423, %v446
    %448 = vmatmul.bf16.gmra.mxu0 %v281
    %v449 = vpop.f32.mrf.mxu0
    %v450 = vadd.f32 %v423, %v449
    %v451 = vpop.f32.mrf.mxu0
    %v452 = vadd.f32 %v423, %v451
    %453 = vdwg.mxu0
    %v454 = vmax.f32 %v435, 0.0
    %v455 = vmax.f32 %v437, 0.0
    %v456 = vmax.f32 %v440, 0.0
    %v457 = vmax.f32 %v442, 0.0
    %v458 = vmax.f32 %v445, 0.0
    %v459 = vmax.f32 %v447, 0.0
    %v460 = vmax.f32 %v450, 0.0
    %v461 = vmax.f32 %v452, 0.0
    %v462 = vpack.c.bf16 %v455, %v454
    %v463 = vpack.c.bf16 %v457, %v456
    %v464 = vpack.c.bf16 %v459, %v458
    %v465 = vpack.c.bf16 %v461, %v460
    %v466 = vld [vmem:[#allocation10] sm:$0xf]
    %v467 = vld [vmem:[#allocation10 + $0x4] sm:$0xf]
    %v468 = vld [vmem:[#allocation10 + $0x8] sm:$0xf]
    %v469 = vld [vmem:[#allocation10 + $0xc] sm:$0xf]
    %v470 = vld [vmem:[#allocation10 + $0x10] sm:$0xf]
    %v471 = vld [vmem:[#allocation10 + $0x14] sm:$0xf]
    %v472 = vld [vmem:[#allocation10 + $0x18] sm:$0xf]
    %v473 = vld [vmem:[#allocation10 + $0x1c] sm:$0xf]
    %v474 = vld [vmem:[#allocation10 + $0x20] sm:$0xf]
    %v475 = vld [vmem:[#allocation10 + $0x24] sm:$0xf]
    %v476 = vld [vmem:[#allocation10 + $0x28] sm:$0xf]
    %v477 = vld [vmem:[#allocation10 + $0x2c] sm:$0xf]
    %v478 = vld [vmem:[#allocation10 + $0x30] sm:$0xf]
    %v479 = vld [vmem:[#allocation10 + $0x34] sm:$0xf]
    %v480 = vld [vmem:[#allocation10 + $0x38] sm:$0xf]
    %v481 = vld [vmem:[#allocation10 + $0x3c] sm:$0xf]
    %v482 = vld [vmem:[%s7] sm:$0x1]
    %v484 = vperm.slane %v482, 0
    %v502 = vunpack.c.l.b16 %v466
    %v503 = vunpack.c.l.b16 %v467
    %v504 = vunpack.c.l.b16 %v468
    %v505 = vunpack.c.l.b16 %v469
    %v506 = vunpack.c.l.b16 %v470
    %v507 = vunpack.c.l.b16 %v471
    %v508 = vunpack.c.l.b16 %v472
    %v509 = vunpack.c.l.b16 %v473
    %v510 = vunpack.c.l.b16 %v474
    %v511 = vunpack.c.l.b16 %v475
    %v512 = vunpack.c.l.b16 %v476
    %v513 = vunpack.c.l.b16 %v477
    %v514 = vunpack.c.l.b16 %v478
    %v515 = vunpack.c.l.b16 %v479
    %v516 = vunpack.c.l.b16 %v480
    %v517 = vunpack.c.l.b16 %v481
    %v518 = vpack.c.b16 %v503, %v502
    %v519 = vpack.c.b16 %v505, %v504
    %v520 = vpack.c.b16 %v507, %v506
    %v521 = vpack.c.b16 %v509, %v508
    %v522 = vpack.c.b16 %v511, %v510
    %v523 = vpack.c.b16 %v513, %v512
    %v524 = vpack.c.b16 %v515, %v514
    %v525 = vpack.c.b16 %v517, %v516
    %534 = vmatpush.bf16.msra.mxu0 %v525
    %535 = vmatpush.bf16.msra.mxu0 %v524
    %536 = vmatpush.bf16.msra.mxu0 %v523
    %537 = vmatpush.bf16.msra.mxu0 %v522
    %538 = vmatpush.bf16.msra.mxu0 %v521
    %539 = vmatpush.bf16.msra.mxu0 %v520
    %540 = vmatpush.bf16.msra.mxu0 %v519
    %541 = vmatpush.bf16.msra.mxu0 %v518
    %542 = vmatmul.bf16.gmra.mxu0 %v462
    %v543 = vpop.f32.mrf.mxu0
    %v544 = vadd.f32 %v484, %v543
    %v545 = vpop.f32.mrf.mxu0
    %v546 = vadd.f32 %v484, %v545
    %547 = vmatmul.bf16.gmra.mxu0 %v463
    %v548 = vpop.f32.mrf.mxu0
    %v549 = vadd.f32 %v484, %v548
    %v550 = vpop.f32.mrf.mxu0
    %v551 = vadd.f32 %v484, %v550
    %552 = vmatmul.bf16.gmra.mxu0 %v464
    %v553 = vpop.f32.mrf.mxu0
    %v554 = vadd.f32 %v484, %v553
    %v555 = vpop.f32.mrf.mxu0
    %v556 = vadd.f32 %v484, %v555
    %557 = vmatmul.bf16.gmra.mxu0 %v465
    %v558 = vpop.f32.mrf.mxu0
    %v559 = vadd.f32 %v484, %v558
    %v560 = vpop.f32.mrf.mxu0
    %v561 = vadd.f32 %v484, %v560
    %562 = vdwg.mxu0
    %563 = vmax.xlane.f32.xlu0 %v544
    %v564 = vpop.xlane.xlu0 %563
    %565 = vmax.xlane.f32.xlu0 %v546
    %v566 = vpop.xlane.xlu0 %565
    %567 = vmax.xlane.f32.xlu0 %v549
    %v568 = vpop.xlane.xlu0 %567
    %569 = vmax.xlane.f32.xlu0 %v551
    %v570 = vpop.xlane.xlu0 %569
    %571 = vmax.xlane.f32.xlu0 %v554
    %v572 = vpop.xlane.xlu0 %571
    %573 = vmax.xlane.f32.xlu0 %v556
    %v574 = vpop.xlane.xlu0 %573
    %575 = vmax.xlane.f32.xlu0 %v559
    %v576 = vpop.xlane.xlu0 %575
    %577 = vmax.xlane.f32.xlu0 %v561
    %v578 = vpop.xlane.xlu0 %577
    %v579 = vsub.f32 %v544, %v564
    %v580 = vsub.f32 %v546, %v566
    %v581 = vsub.f32 %v549, %v568
    %v582 = vsub.f32 %v551, %v570
    %v583 = vsub.f32 %v554, %v572
    %v584 = vsub.f32 %v556, %v574
    %v585 = vsub.f32 %v559, %v576
    %v586 = vsub.f32 %v561, %v578
    %v587 = vmul.f32 %v579, 1.442695
    %v588 = vpow.pop %v587
    %v589 = vmul.f32 %v580, 1.442695
    %v590 = vpow.pop %v589
    %v591 = vmul.f32 %v581, 1.442695
    %v592 = vpow.pop %v591
    %v593 = vmul.f32 %v582, 1.442695
    %v594 = vpow.pop %v593
    %v595 = vmul.f32 %v583, 1.442695
    %v596 = vpow.pop %v595
    %v597 = vmul.f32 %v584, 1.442695
    %v598 = vpow.pop %v597
    %v599 = vmul.f32 %v585, 1.442695
    %v600 = vpow.pop %v599
    %v601 = vmul.f32 %v586, 1.442695
    %v602 = vpow.pop %v601
    %603 = vadd.xlane.f32.xlu0 %v588
    %v604 = vpop.xlane.xlu0 %603
    %605 = vadd.xlane.f32.xlu0 %v590
    %v606 = vpop.xlane.xlu0 %605
    %607 = vadd.xlane.f32.xlu0 %v592
    %v608 = vpop.xlane.xlu0 %607
    %609 = vadd.xlane.f32.xlu0 %v594
    %v610 = vpop.xlane.xlu0 %609
    %611 = vadd.xlane.f32.xlu0 %v596
    %v612 = vpop.xlane.xlu0 %611
    %613 = vadd.xlane.f32.xlu0 %v598
    %v614 = vpop.xlane.xlu0 %613
    %615 = vadd.xlane.f32.xlu0 %v600
    %v616 = vpop.xlane.xlu0 %615
    %617 = vadd.xlane.f32.xlu0 %v602
    %v618 = vpop.xlane.xlu0 %617
    %v619 = vrcp.pop %v604
    %v620 = vmul.f32 %v604, %v619
    %v621 = vsub.f32 1.0, %v620
    %v622 = vmul.f32 %v619, %v621
    %v623 = vadd.f32 %v619, %v622
    %vm624 = vweird.f32 %v604
    %vm625 = vweird.f32 %v619
    %vm626 = vmor %vm624, %vm625
    %v627 = vsel %vm626, %v619, %v623
    %v628 = vand.u32 2147483647, %v604
    %vm629 = vcmp.eq.f32.partialorder %v628, 8.507059e+37
    %v630 = vand.u32 %v604, 2147483648
    %v631 = vor.u32 1.1754944e-38, %v630
    %v632 = vsel %vm629, %v631, %v627
    %v633 = vmul.f32 %v588, %v632
    %v634 = vrcp.pop %v606
    %v635 = vmul.f32 %v606, %v634
    %v636 = vsub.f32 1.0, %v635
    %v637 = vmul.f32 %v634, %v636
    %v638 = vadd.f32 %v634, %v637
    %vm639 = vweird.f32 %v606
    %vm640 = vweird.f32 %v634
    %vm641 = vmor %vm639, %vm640
    %v642 = vsel %vm641, %v634, %v638
    %v643 = vand.u32 2147483647, %v606
    %vm644 = vcmp.eq.f32.partialorder %v643, 8.507059e+37
    %v645 = vand.u32 %v606, 2147483648
    %v646 = vor.u32 1.1754944e-38, %v645
    %v647 = vsel %vm644, %v646, %v642
    %v648 = vmul.f32 %v590, %v647
    %v649 = vrcp.pop %v608
    %v650 = vmul.f32 %v608, %v649
    %v651 = vsub.f32 1.0, %v650
    %v652 = vmul.f32 %v649, %v651
    %v653 = vadd.f32 %v649, %v652
    %vm654 = vweird.f32 %v608
    %vm655 = vweird.f32 %v649
    %vm656 = vmor %vm654, %vm655
    %v657 = vsel %vm656, %v649, %v653
    %v658 = vand.u32 2147483647, %v608
    %vm659 = vcmp.eq.f32.partialorder %v658, 8.507059e+37
    %v660 = vand.u32 %v608, 2147483648
    %v661 = vor.u32 1.1754944e-38, %v660
    %v662 = vsel %vm659, %v661, %v657
    %v663 = vmul.f32 %v592, %v662
    %v664 = vrcp.pop %v610
    %v665 = vmul.f32 %v610, %v664
    %v666 = vsub.f32 1.0, %v665
    %v667 = vmul.f32 %v664, %v666
    %v668 = vadd.f32 %v664, %v667
    %vm669 = vweird.f32 %v610
    %vm670 = vweird.f32 %v664
    %vm671 = vmor %vm669, %vm670
    %v672 = vsel %vm671, %v664, %v668
    %v673 = vand.u32 2147483647, %v610
    %vm674 = vcmp.eq.f32.partialorder %v673, 8.507059e+37
    %v675 = vand.u32 %v610, 2147483648
    %v676 = vor.u32 1.1754944e-38, %v675
    %v677 = vsel %vm674, %v676, %v672
    %v678 = vmul.f32 %v594, %v677
    %v679 = vrcp.pop %v612
    %v680 = vmul.f32 %v612, %v679
    %v681 = vsub.f32 1.0, %v680
    %v682 = vmul.f32 %v679, %v681
    %v683 = vadd.f32 %v679, %v682
    %vm684 = vweird.f32 %v612
    %vm685 = vweird.f32 %v679
    %vm686 = vmor %vm684, %vm685
    %v687 = vsel %vm686, %v679, %v683
    %v688 = vand.u32 2147483647, %v612
    %vm689 = vcmp.eq.f32.partialorder %v688, 8.507059e+37
    %v690 = vand.u32 %v612, 2147483648
    %v691 = vor.u32 1.1754944e-38, %v690
    %v692 = vsel %vm689, %v691, %v687
    %v693 = vmul.f32 %v596, %v692
    %v694 = vrcp.pop %v614
    %v695 = vmul.f32 %v614, %v694
    %v696 = vsub.f32 1.0, %v695
    %v697 = vmul.f32 %v694, %v696
    %v698 = vadd.f32 %v694, %v697
    %vm699 = vweird.f32 %v614
    %vm700 = vweird.f32 %v694
    %vm701 = vmor %vm699, %vm700
    %v702 = vsel %vm701, %v694, %v698
    %v703 = vand.u32 2147483647, %v614
    %vm704 = vcmp.eq.f32.partialorder %v703, 8.507059e+37
    %v705 = vand.u32 %v614, 2147483648
    %v706 = vor.u32 1.1754944e-38, %v705
    %v707 = vsel %vm704, %v706, %v702
    %v708 = vmul.f32 %v598, %v707
    %v709 = vrcp.pop %v616
    %v710 = vmul.f32 %v616, %v709
    %v711 = vsub.f32 1.0, %v710
    %v712 = vmul.f32 %v709, %v711
    %v713 = vadd.f32 %v709, %v712
    %vm714 = vweird.f32 %v616
    %vm715 = vweird.f32 %v709
    %vm716 = vmor %vm714, %vm715
    %v717 = vsel %vm716, %v709, %v713
    %v718 = vand.u32 2147483647, %v616
    %vm719 = vcmp.eq.f32.partialorder %v718, 8.507059e+37
    %v720 = vand.u32 %v616, 2147483648
    %v721 = vor.u32 1.1754944e-38, %v720
    %v722 = vsel %vm719, %v721, %v717
    %v723 = vmul.f32 %v600, %v722
    %v724 = vrcp.pop %v618
    %v725 = vmul.f32 %v618, %v724
    %v726 = vsub.f32 1.0, %v725
    %v727 = vmul.f32 %v724, %v726
    %v728 = vadd.f32 %v724, %v727
    %vm729 = vweird.f32 %v618
    %vm730 = vweird.f32 %v724
    %vm731 = vmor %vm729, %vm730
    %v732 = vsel %vm731, %v724, %v728
    %v733 = vand.u32 2147483647, %v618
    %vm734 = vcmp.eq.f32.partialorder %v733, 8.507059e+37
    %v735 = vand.u32 %v618, 2147483648
    %v736 = vor.u32 1.1754944e-38, %v735
    %v737 = vsel %vm734, %v736, %v732
    %v738 = vmul.f32 %v602, %v737
    %739 = vst [vmem:[#allocation11] sm:$0xff] %v633
    %740 = vst [vmem:[#allocation11 + $0x8] sm:$0xff] %v648
    %741 = vst [vmem:[#allocation11 + $0x10] sm:$0xff] %v663
    %742 = vst [vmem:[#allocation11 + $0x18] sm:$0xff] %v678
    %743 = vst [vmem:[#allocation11 + $0x20] sm:$0xff] %v693
    %744 = vst [vmem:[#allocation11 + $0x28] sm:$0xff] %v708
    %745 = vst [vmem:[#allocation11 + $0x30] sm:$0xff] %v723
    %746 = vst [vmem:[#allocation11 + $0x38] sm:$0xff] %v738
    // Predicated region
    $region54: #{tpu_custom_call.1} parent=1 // pred_check
      _
    $region55: #{tpu_custom_call.1} parent=1 // pred_check_branch
      %748 = sbr.rel (0) target = $region57
    $region56: #{tpu_custom_call.1} parent=1 // pred_region
      %750 = vsyncadd [#allocation4], 0
      %s751 = sshll.u32 [#allocation11], 4
      %s752 = int_to_ptr.vmem [resolvable:$true] %s751
      %s753 = sshll.u32 %s8, 4
      %s754 = int_to_ptr.hbm [resolvable:$true] %s753
      %759 = dma.vmem_to_hbm [thread:$0]  %s752, 1024, %s754, [#allocation4], 128, 128, 8
    $region57: #{tpu_custom_call.1} parent=1 // pred_fallthru
      _
    // Predicated region
    $region58: #{tpu_custom_call.1} parent=1 // pred_check
      _
    $region59: #{tpu_custom_call.1} parent=1 // pred_check_branch
      %761 = sbr.rel (0) target = $region61
    $region60: #{tpu_custom_call.1} parent=1 // pred_region
      %763 = dma.done [#allocation4], 1024
    $region61: #{tpu_custom_call.1} parent=1 // pred_fallthru
      _
    %764 = vsyncpa [#allocation3], 1
    %765 = vsyncpa [#allocation6], 1
    %766 = vsyncpa [#allocation9], 1
    %767 = vsyncpa [#allocation4], 1

</llo_original>
